<compile_context>
chip_gen: v7x
topology: tpu7x:2x2x1
jax: 0.10.0
libtpu: 0.0.40
codegen_flags: <defaults>
</compile_context>

<pallas_src>
import jax
import jax.numpy as jnp
import numpy as np
from jax.experimental import pallas as pl
from jax.experimental.pallas import tpu as pltpu


def _round_up(x, m):
    return (x + m - 1) // m * m


def _sublane(dtype):
    """Minimum sublane multiple for a row-tiled block of this dtype."""
    isz = jnp.dtype(dtype).itemsize
    return 8 if isz >= 4 else 32 // isz      # f32: 8, bf16: 16, int8/fp8: 32


def siren_kernel(x_ref, w_ref, b_ref, o_ref):
    # x_ref: (tile_n, K)         -- row tile of inputs (K un-padded)
    # w_ref: (K, dim_out_p)      -- resident, pre-transposed, w0 folded in
    # b_ref: (1, dim_out_p)      -- resident f32, w0 folded in
    # o_ref: (tile_n, dim_out_p)
    acc = jnp.dot(x_ref[...], w_ref[...], preferred_element_type=jnp.float32)
    acc = acc + b_ref[...]
    o_ref[...] = jnp.sin(acc).astype(o_ref.dtype)


def prepare_siren_params(weight, bias, *, w0=1.0, dtype=jnp.float32, in_width=None):
    """One-time parameter transform (do this at init, not per call).

    Folds w0 into W and b, transposes W to the MXU-canonical (K, N) layout,
    zero-pads dim_out up to a multiple of 128 (lane-dense output stores) and
    optionally zero-pads K up to `in_width` (pass the previous layer's padded
    output width when stacking layers with slice_output=False).

    weight: (dim_out, dim_in) in PyTorch nn.Linear convention.
    bias:   (dim_out,) or None.
    dtype:  jnp.float32 (default) or jnp.bfloat16 for the fast hidden-layer path
            (MXU accumulation stays f32 either way).
    Returns (w_t, b_row, dim_out).
    """
    dim_out, dim_in = weight.shape
    in_width = dim_in if in_width is None else in_width
    assert in_width >= dim_in
    dim_out_p = _round_up(dim_out, 128)

    w_t = (w0 * weight.astype(jnp.float32)).T                       # (dim_in, dim_out)
    w_t = jnp.pad(w_t, ((0, in_width - dim_in), (0, dim_out_p - dim_out)))
    w_t = w_t.astype(dtype)

    if bias is None:
        b = jnp.zeros((dim_out,), jnp.float32)
    else:
        b = w0 * bias.astype(jnp.float32)
    b = jnp.pad(b, (0, dim_out_p - dim_out)).reshape(1, dim_out_p)
    return w_t, b, dim_out


def siren_layer(x, w_t, b_row, dim_out, *, tile_n=1024, out_dtype=None,
                slice_output=True, vmem_budget_bytes=40 * 1024 * 1024):
    """Pallas SirenLayer.forward: sin(w0 * (x @ W.T + b)), w0 folded into params.

    x:     (..., K) with K == w_t.shape[0]
    w_t:   (K, dim_out_p) from prepare_siren_params
    b_row: (1, dim_out_p) from prepare_siren_params
    Returns (..., dim_out) if slice_output else (..., dim_out_p) (for chaining).
    """
    if out_dtype is None:
        out_dtype = x.dtype
    k, dim_out_p = w_t.shape
    *batch, xk = x.shape
    assert xk == k, f"x width {xk} != prepared weight K {k}"
    compute_dtype = w_t.dtype

    x2 = x.reshape(-1, k).astype(compute_dtype)
    n = x2.shape[0]

    in_isz = jnp.dtype(compute_dtype).itemsize
    out_isz = jnp.dtype(out_dtype).itemsize
    sub = max(_sublane(compute_dtype), _sublane(out_dtype))

    # Row tile: as large as the VMEM budget allows (amortizes ~0.35us/step grid
    # overhead), but (a) no bigger than the rounded-up batch, and (b) capped so
    # there are >= 2 grid steps when there is enough work, so the "parallel" row
    # axis can shard across both TensorCores on v7x.
    tile_n = max(sub, _round_up(tile_n, sub))
    tile_n = min(tile_n, _round_up(n, sub))
    if n > 2 * sub:
        tile_n = min(tile_n, _round_up(pl.cdiv(n, 2), sub))

    def footprint(t):
        x_buf = t * _round_up(k, 128) * in_isz          # double-buffered
        o_buf = t * dim_out_p * out_isz                 # double-buffered
        w_buf = _round_up(k, sub) * dim_out_p * in_isz  # single resident copy
        return 2 * (x_buf + o_buf) + w_buf + dim_out_p * 4

    while footprint(tile_n) > vmem_budget_bytes and tile_n > sub:
        tile_n = max(sub, _round_up(tile_n // 2, sub))

    grid = (pl.cdiv(n, tile_n),)
    vmem_limit = int(min(64 * 1024 * 1024,
                         max(32 * 1024 * 1024, footprint(tile_n) + 8 * 1024 * 1024)))

    cost = pl.CostEstimate(
        flops=2 * n * k * dim_out_p,
        transcendentals=n * dim_out_p,
        bytes_accessed=(n * k * in_isz                 # x
                        + k * dim_out_p * in_isz       # W (resident)
                        + dim_out_p * 4                # bias
                        + n * dim_out_p * out_isz))    # out

    def call(resident_mode):
        res_kw = {} if resident_mode is None else {"pipeline_mode": resident_mode}
        return pl.pallas_call(
            siren_kernel,
            out_shape=jax.ShapeDtypeStruct((n, dim_out_p), out_dtype),
            grid=grid,
            in_specs=[
                pl.BlockSpec((tile_n, k), lambda i: (i, 0)),               # x: streamed
                pl.BlockSpec((k, dim_out_p), lambda i: (0, 0), **res_kw),  # W: resident
                pl.BlockSpec((1, dim_out_p), lambda i: (0, 0), **res_kw),  # b: resident
            ],
            out_specs=pl.BlockSpec((tile_n, dim_out_p), lambda i: (i, 0)),
            compiler_params=pltpu.CompilerParams(
                dimension_semantics=("parallel",),     # shard row tiles across TCs
                vmem_limit_bytes=vmem_limit),
            cost_estimate=cost,
        )(x2, w_t, b_row)

    try:
        # Constant index_maps => double-buffering W/b only wastes VMEM; keep one
        # resident copy of each.
        out_p = call(pl.Buffered(1))
    except Exception:
        # TODO(synk): drop this fallback once single-buffered pipeline_mode is
        # guaranteed available in the deployed jax version.
        out_p = call(None)

    if slice_output and dim_out != dim_out_p:
        out_p = out_p[:, :dim_out]
    width = dim_out if slice_output else dim_out_p
    return out_p.reshape(*batch, width)


def init_siren_params(key, dim_in, dim_out, *, w0=1.0, c=6.0, is_first=False):
    """Deterministic replica of SirenLayer.init_ (uniform in [-w_std, w_std])."""
    w_std = (1.0 / dim_in) if is_first else (np.sqrt(c / dim_in) / w0)
    k_w, k_b = jax.random.split(key)
    weight = jax.random.uniform(
        k_w, (dim_out, dim_in), jnp.float32, minval=-w_std, maxval=w_std)
    bias = jax.random.uniform(
        k_b, (dim_out,), jnp.float32, minval=-w_std, maxval=w_std)
    return weight, bias


if __name__ == "__main__":
    DIM_IN, HIDDEN, DIM_OUT = 32, 32, 24
    W0, C = 30.0, 6.0

    key = jax.random.PRNGKey(0)
    k_x, k_p1, k_p2 = jax.random.split(key, 3)
    w1, b1 = init_siren_params(k_p1, DIM_IN, HIDDEN, w0=W0, c=C, is_first=False)
    w2, b2 = init_siren_params(k_p2, HIDDEN, DIM_OUT, w0=W0, c=C, is_first=False)

    def ref_layer(x, w, b):
        return jnp.sin(W0 * (x @ w.T + b[None, :]))

    # ---- f32 path: single layer, divisible and non-divisible row counts ----
    w1p, b1p, d1 = prepare_siren_params(w1, b1, w0=W0)
    for n in (8, 13):
        x_n = jax.random.normal(jax.random.fold_in(k_x, n), (n, DIM_IN), jnp.float32)
        out = siren_layer(x_n, w1p, b1p, d1)
        jax.block_until_ready(out)
        np.testing.assert_allclose(np.asarray(out), np.asarray(ref_layer(x_n, w1, b1)),
                                   rtol=1e-5, atol=5e-5)

    # ---- two stacked layers, padded activations kept between layers ----
    x = jax.random.normal(k_x, (8, DIM_IN), jnp.float32)
    h_pad = siren_layer(x, w1p, b1p, d1, slice_output=False)   # (8, 128); pad cols are 0
    w2p, b2p, d2 = prepare_siren_params(w2, b2, w0=W0, in_width=h_pad.shape[-1])
    out2 = siren_layer(h_pad, w2p, b2p, d2)
    jax.block_until_ready(out2)
    ref2 = ref_layer(ref_layer(x, w1, b1), w2, b2)
    np.testing.assert_allclose(np.asarray(out2), np.asarray(ref2),
                               rtol=1e-3, atol=5e-4)

    # ---- bf16 fast path (bf16 x/W, f32 accumulation), looser tolerance ----
    w1bf, b1bf, _ = prepare_siren_params(w1, b1, w0=W0, dtype=jnp.bfloat16)
    out_bf = siren_layer(x, w1bf, b1bf, d1, out_dtype=jnp.float32)
    jax.block_until_ready(out_bf)
    assert np.max(np.abs(np.asarray(out_bf) - np.asarray(ref_layer(x, w1, b1)))) < 0.2

    print("KERNEL_OK")
</pallas_src>

<mosaic_0001>
module attributes {stable_mosaic.version = 11 : i64} {
  func.func @siren_kernel(%arg0: i32, %arg1: memref<8x32xf32, #tpu.memory_space<vmem>>, %arg2: memref<32x128xf32, #tpu.memory_space<vmem>>, %arg3: memref<1x128xf32, #tpu.memory_space<vmem>>, %arg4: memref<8x128xf32, #tpu.memory_space<vmem>>) attributes {dimension_semantics = [#tpu.dimension_semantics<parallel>], iteration_bounds = array<i64: 1>, scalar_prefetch = 0 : i64, scratch_operands = 0 : i64, tpu.core_type = #tpu.core_type<tc>, window_params = [{transform_indices = @transform_0, window_bounds = array<i64: 8, 32>}, {pipeline_mode = #tpu.pipeline_mode<synchronous>, transform_indices = @transform_1, window_bounds = array<i64: 32, 128>}, {pipeline_mode = #tpu.pipeline_mode<synchronous>, transform_indices = @transform_2, window_bounds = array<i64: 1, 128>}, {transform_indices = @transform_3, window_bounds = array<i64: 8, 128>}]} {
    %c0 = arith.constant 0 : index
    %c0_0 = arith.constant 0 : index
    %0 = vector.load %arg1[%c0, %c0_0] : memref<8x32xf32, #tpu.memory_space<vmem>>, vector<8x32xf32>
    %c0_1 = arith.constant 0 : index
    %c0_2 = arith.constant 0 : index
    %1 = vector.load %arg2[%c0_1, %c0_2] : memref<32x128xf32, #tpu.memory_space<vmem>>, vector<32x128xf32>
    %cst = arith.constant dense<0.000000e+00> : vector<8x128xf32>
    %2 = tpu.matmul %0, %1, %cst {dimension_numbers = #tpu.dot_dimension_numbers<[1], [0], [0], [1], [0, 0, 1, 1], [], []>} : vector<8x32xf32>, vector<32x128xf32>, vector<8x128xf32> -> vector<8x128xf32>
    %c0_3 = arith.constant 0 : index
    %c0_4 = arith.constant 0 : index
    %3 = vector.load %arg3[%c0_3, %c0_4] : memref<1x128xf32, #tpu.memory_space<vmem>>, vector<1x128xf32>
    %4 = vector.broadcast %3 : vector<1x128xf32> to vector<8x128xf32>
    %5 = arith.addf %2, %4 : vector<8x128xf32>
    %6 = math.sin %5 : vector<8x128xf32>
    %c0_5 = arith.constant 0 : index
    %c0_6 = arith.constant 0 : index
    %7 = vector.load %arg4[%c0_5, %c0_6] : memref<8x128xf32, #tpu.memory_space<vmem>>, vector<8x128xf32>
    tpu.vector_store %arg4[%c0_5, %c0_6], %6 {strides = array<i32>} : memref<8x128xf32, #tpu.memory_space<vmem>>, vector<8x128xf32>,
    return
  }
  func.func @transform_0(%arg0: i32) -> (i32, i32) {
    %c0_i32 = arith.constant 0 : i32
    %c0_i32_0 = arith.constant 0 : i32
    return %arg0, %c0_i32 : i32, i32
  }
  func.func @transform_1(%arg0: i32) -> (i32, i32) {
    %c0_i32 = arith.constant 0 : i32
    %c0_i32_0 = arith.constant 0 : i32
    %c0_i32_1 = arith.constant 0 : i32
    return %c0_i32, %c0_i32_0 : i32, i32
  }
  func.func @transform_2(%arg0: i32) -> (i32, i32) {
    %c0_i32 = arith.constant 0 : i32
    %c0_i32_0 = arith.constant 0 : i32
    %c0_i32_1 = arith.constant 0 : i32
    return %c0_i32, %c0_i32_0 : i32, i32
  }
  func.func @transform_3(%arg0: i32) -> (i32, i32) {
    %c0_i32 = arith.constant 0 : i32
    %c0_i32_0 = arith.constant 0 : i32
    return %arg0, %c0_i32 : i32, i32
  }
}

module attributes {stable_mosaic.version = 11 : i64} {
  func.func @siren_kernel(%arg0: i32, %arg1: memref<8x32xf32, #tpu.memory_space<vmem>>, %arg2: memref<32x128xf32, #tpu.memory_space<vmem>>, %arg3: memref<1x128xf32, #tpu.memory_space<vmem>>, %arg4: memref<8x128xf32, #tpu.memory_space<vmem>>) attributes {dimension_semantics = [#tpu.dimension_semantics<parallel>], iteration_bounds = array<i64: 1>, scalar_prefetch = 0 : i64, scratch_operands = 0 : i64, tpu.core_type = #tpu.core_type<tc>, window_params = [{transform_indices = @transform_0, window_bounds = array<i64: 8, 32>}, {pipeline_mode = #tpu.pipeline_mode<synchronous>, transform_indices = @transform_1, window_bounds = array<i64: 32, 128>}, {pipeline_mode = #tpu.pipeline_mode<synchronous>, transform_indices = @transform_2, window_bounds = array<i64: 1, 128>}, {transform_indices = @transform_3, window_bounds = array<i64: 8, 128>}]} {
    %c0 = arith.constant 0 : index
    %c0_0 = arith.constant 0 : index
    %0 = vector.load %arg1[%c0, %c0_0] : memref<8x32xf32, #tpu.memory_space<vmem>>, vector<8x32xf32>
    %c0_1 = arith.constant 0 : index
    %c0_2 = arith.constant 0 : index
    %1 = vector.load %arg2[%c0_1, %c0_2] : memref<32x128xf32, #tpu.memory_space<vmem>>, vector<32x128xf32>
    %cst = arith.constant dense<0.000000e+00> : vector<8x128xf32>
    %2 = tpu.matmul %0, %1, %cst {dimension_numbers = #tpu.dot_dimension_numbers<[1], [0], [0], [1], [0, 0, 1, 1], [], []>} : vector<8x32xf32>, vector<32x128xf32>, vector<8x128xf32> -> vector<8x128xf32>
    %c0_3 = arith.constant 0 : index
    %c0_4 = arith.constant 0 : index
    %3 = vector.load %arg3[%c0_3, %c0_4] : memref<1x128xf32, #tpu.memory_space<vmem>>, vector<1x128xf32>
    %4 = vector.broadcast %3 : vector<1x128xf32> to vector<8x128xf32>
    %5 = arith.addf %2, %4 : vector<8x128xf32>
    %6 = math.sin %5 : vector<8x128xf32>
    %c0_5 = arith.constant 0 : index
    %c0_6 = arith.constant 0 : index
    %7 = vector.load %arg4[%c0_5, %c0_6] : memref<8x128xf32, #tpu.memory_space<vmem>>, vector<8x128xf32>
    tpu.vector_store %arg4[%c0_5, %c0_6], %6 {strides = array<i32>} : memref<8x128xf32, #tpu.memory_space<vmem>>, vector<8x128xf32>,
    return
  }
  func.func @transform_0(%arg0: i32) -> (i32, i32) {
    %c0_i32 = arith.constant 0 : i32
    %c0_i32_0 = arith.constant 0 : i32
    return %arg0, %c0_i32 : i32, i32
  }
  func.func @transform_1(%arg0: i32) -> (i32, i32) {
    %c0_i32 = arith.constant 0 : i32
    %c0_i32_0 = arith.constant 0 : i32
    %c0_i32_1 = arith.constant 0 : i32
    return %c0_i32, %c0_i32_0 : i32, i32
  }
  func.func @transform_2(%arg0: i32) -> (i32, i32) {
    %c0_i32 = arith.constant 0 : i32
    %c0_i32_0 = arith.constant 0 : i32
    %c0_i32_1 = arith.constant 0 : i32
    return %c0_i32, %c0_i32_0 : i32, i32
  }
  func.func @transform_3(%arg0: i32) -> (i32, i32) {
    %c0_i32 = arith.constant 0 : i32
    %c0_i32_0 = arith.constant 0 : i32
    return %arg0, %c0_i32 : i32, i32
  }
}

</mosaic_0001>

<llo_original>
// kernel: tpu_custom_call.1
$region0: #{tpu_custom_call.1}
  #allocation0 [shape = 'u32[]', space=smem, size = 0x4, offset = 0x4, fixed_abs, tag = 'smem constant byte address 0x4 - core index']
  #allocation1 [shape = 'u32[144,128]{1,0:T(1,128)}', space=vmem, size = 0x12000, scoped, tag = 'internal scratch']
  %s0 = inlined_call_operand.hbm [shape: f32[8,32], index: 0, kind: input, shape index: {}]
  %s1 = inlined_call_operand.hbm [shape: f32[32,128], index: 1, kind: input, shape index: {}]
  %s2 = inlined_call_operand.vmem [shape: f32[1,128], index: 2, kind: input, shape index: {}]
  %s3 = inlined_call_operand.hbm [shape: f32[8,128], index: 3, kind: output, shape index: {}]
  %s4 = sld [smem:[#allocation0]]
  $region30: #{tpu_custom_call.1} parent=0
    _
  %s6 = ssub.s32 1, %s4
  %s7 = scalar_select 0, %s6, %s4
  $region1: #{tpu_custom_call.1} parent=0
    #allocation2 [shape = 'u8[4096]{0}', space=vmem, size = 0x1000, scoped, tag = 'input window, operand 0, single buffered']
    #allocation3 [shape = 's32[1]{0}', space=sflag, size = 0x4, scoped, tag = 'scoped memory for tpu_custom_call.1']
    #allocation4 [shape = 's32[1]{0}', space=sflag, size = 0x4, scoped, tag = 'scoped memory for tpu_custom_call.1']
    #allocation5 [shape = 'u8[16384]{0}', space=vmem, size = 0x4000, scoped, tag = 'input window, operand 1, single buffered']
    #allocation6 [shape = 's32[1]{0}', space=sflag, size = 0x4, scoped, tag = 'scoped memory for tpu_custom_call.1']
    #allocation7 [shape = 'u8[4096]{0}', space=vmem, size = 0x1000, scoped, tag = 'output window, operand 0, single buffered']
    %8 = vsyncpa [#allocation3], 0
    %9 = vsyncpa [#allocation6], 0
    %10 = vsyncpa [#allocation4], 0
    // Predicated region
    $region2: #{tpu_custom_call.1} parent=1 // pred_check
      _
    $region3: #{tpu_custom_call.1} parent=1 // pred_check_branch
      %12 = sbr.rel (0) target = $region5
    $region4: #{tpu_custom_call.1} parent=1 // pred_region
      %s14 = ssub.s32 128, 128
      %15 = vsyncadd [#allocation3], %s14
      %s17 = sshll.u32 [#allocation2], 4
      %s18 = int_to_ptr.vmem [resolvable:$true] %s17
      %20 = dma.hbm_to_vmem [thread:$0]  %s0, 128, %s18, [#allocation3]
    $region5: #{tpu_custom_call.1} parent=1 // pred_fallthru
      _
    // Predicated region
    $region6: #{tpu_custom_call.1} parent=1 // pred_check
      _
    $region7: #{tpu_custom_call.1} parent=1 // pred_check_branch
      %22 = sbr.rel (0) target = $region9
    $region8: #{tpu_custom_call.1} parent=1 // pred_region
      %s24 = ssub.s32 512, 512
      %25 = vsyncadd [#allocation6], %s24
      %s26 = sshll.u32 [#allocation5], 4
      %s27 = int_to_ptr.vmem [resolvable:$true] %s26
      %32 = dma.hbm_to_vmem [thread:$0]  %s1, 512, %s27, [#allocation6], 128, 128, 8
    $region9: #{tpu_custom_call.1} parent=1 // pred_fallthru
      _
    // Predicated region
    $region10: #{tpu_custom_call.1} parent=1 // pred_check
      _
    $region11: #{tpu_custom_call.1} parent=1 // pred_check_branch
      %34 = sbr.rel (0) target = $region13
    $region12: #{tpu_custom_call.1} parent=1 // pred_region
      _
    $region13: #{tpu_custom_call.1} parent=1 // pred_fallthru
      _
    // Predicated region
    $region14: #{tpu_custom_call.1} parent=1 // pred_check
      _
    $region15: #{tpu_custom_call.1} parent=1 // pred_check_branch
      %36 = sbr.rel (0) target = $region17
    $region16: #{tpu_custom_call.1} parent=1 // pred_region
      %37 = dma.done [#allocation3], 128
    $region17: #{tpu_custom_call.1} parent=1 // pred_fallthru
      _
    // Predicated region
    $region18: #{tpu_custom_call.1} parent=1 // pred_check
      _
    $region19: #{tpu_custom_call.1} parent=1 // pred_check_branch
      %39 = sbr.rel (0) target = $region21
    $region20: #{tpu_custom_call.1} parent=1 // pred_region
      %40 = dma.done [#allocation6], 512
    $region21: #{tpu_custom_call.1} parent=1 // pred_fallthru
      _
    %v41 = vld [vmem:[#allocation2] sm:$0xff]
    %v42 = vld [vmem:[#allocation5] sm:$0xff]
    %v43 = vld [vmem:[#allocation5 + $0x8] sm:$0xff]
    %v44 = vld [vmem:[#allocation5 + $0x10] sm:$0xff]
    %v45 = vld [vmem:[#allocation5 + $0x18] sm:$0xff]
    %v46 = vld [vmem:[%s2] sm:$0x1]
    %v48 = vlaneseq
    %v49 = vshrl.u32 %v48, 7
    %v50 = vsub.s32 0, %v49
    %v51 = vrot.slane %v46, %v50
    %vm53 = vcmask 261120
    %v55 = vsel %vm53, %v41, 0
    %57 = vmatprep.subr.mxu0 0.0
    %58 = vmatpush1.msra.mxu0 %v42
    %59 = vmatprep.subr.mxu0 0.0
    %60 = vmatpush1.msra.mxu0 %v43
    %61 = vmatprep.subr.mxu0 0.0
    %62 = vmatpush1.msra.mxu0 %v44
    %63 = vmatprep.subr.mxu0 0.0
    %64 = vmatpush1.msra.mxu0 %v45
    %65 = vmatprep.subr.mxu0 0.0
    %66 = vmatpush1.msra.mxu0 0.0
    %67 = vmatprep.subr.mxu0 0.0
    %68 = vmatpush1.msra.mxu0 0.0
    %69 = vmatprep.subr.mxu0 0.0
    %70 = vmatpush1.msra.mxu0 0.0
    %71 = vmatprep.subr.mxu0 0.0
    %72 = vmatpush1.msra.mxu0 0.0
    %73 = vmatprep.subr.mxu0 0.0
    %74 = vmatpush1.msra.mxu0 0.0
    %75 = vmatprep.subr.mxu0 0.0
    %76 = vmatpush1.msra.mxu0 0.0
    %77 = vmatprep.subr.mxu0 0.0
    %78 = vmatpush1.msra.mxu0 0.0
    %79 = vmatprep.subr.mxu0 0.0
    %80 = vmatpush1.msra.mxu0 0.0
    %81 = vmatprep.subr.mxu0 0.0
    %82 = vmatpush1.msra.mxu0 0.0
    %83 = vmatprep.subr.mxu0 0.0
    %84 = vmatpush1.msra.mxu0 0.0
    %85 = vmatprep.subr.mxu0 0.0
    %86 = vmatpush1.msra.mxu0 0.0
    %87 = vmatprep.subr.mxu0 0.0
    %88 = vmatpush1.msra.mxu0 0.0
    %89 = vmatprep.subr.mxu0 0.0
    %90 = vmatpush1.msra.mxu0 0.0
    %91 = vmatprep.subr.mxu0 0.0
    %92 = vmatpush1.msra.mxu0 0.0
    %93 = vmatprep.subr.mxu0 0.0
    %94 = vmatpush1.msra.mxu0 0.0
    %95 = vmatprep.subr.mxu0 0.0
    %96 = vmatpush1.msra.mxu0 0.0
    %97 = vmatprep.subr.mxu0 0.0
    %98 = vmatpush1.msra.mxu0 0.0
    %99 = vmatprep.subr.mxu0 0.0
    %100 = vmatpush1.msra.mxu0 0.0
    %101 = vmatprep.subr.mxu0 0.0
    %102 = vmatpush1.msra.mxu0 0.0
    %103 = vmatprep.subr.mxu0 0.0
    %104 = vmatpush1.msra.mxu0 0.0
    %105 = vmatprep.subr.mxu0 0.0
    %106 = vmatpush1.msra.mxu0 0.0
    %107 = vmatprep.subr.mxu0 0.0
    %108 = vmatpush1.msra.mxu0 0.0
    %109 = vmatprep.subr.mxu0 0.0
    %110 = vmatpush1.msra.mxu0 0.0
    %111 = vmatprep.subr.mxu0 0.0
    %112 = vmatpush1.msra.mxu0 0.0
    %113 = vmatprep.subr.mxu0 0.0
    %114 = vmatpush1.msra.mxu0 0.0
    %115 = vmatprep.subr.mxu0 0.0
    %116 = vmatpush1.msra.mxu0 0.0
    %117 = vmatprep.subr.mxu0 0.0
    %118 = vmatpush1.msra.mxu0 0.0
    %119 = vmatprep.subr.mxu0 0.0
    %120 = vmatpush1.msra.mxu0 0.0
    %121 = vmatprep.mubr.f32.mxu0 0.0
    %122 = vmatmul.mubr.f32.gmra.mrb[0].mxu0 %v55
    %v123 = vpop.f32.mrb[0].mxu0
    %v124 = vadd.f32 %v51, %v123
    %v125 = vpop.f32.mrb[0].mxu0
    %126 = vdwg.mxu0
    %v127 = vand.u32 2147483647, %v124
    %vm128 = vcmp.le.f32.partialorder %v127, 0.7853982
    %vm129 = vcmp.lt.s32.totalorder %v124, 0
    %v130 = vand.u32 %v124, 2139095040
    %v131 = vshrl.u32 %v130, 23
    %v132 = vsub.s32 %v131, 127
    %v133 = vand.u32 2147483647, %v124
    %v134 = vand.u32 %v133, 8388607
    %v135 = vor.u32 %v134, 8388608
    %v136 = vsub.s32 0, %v135
    %v137 = vadd.s32 %v132, 1
    %vm138 = vcmp.gt.s32.totalorder %v137, 0
    %v139 = vsel %vm138, %v137, 0
    %v140 = vshrl.u32 %v139, 5
    %v141 = vand.u32 %v139, 31
    %v142 = vsub.s32 32, %v141
    %v143 = vshrl.u32 683565275, %v142
    %v144 = vshll.u32 683565275, %v141
    %v145 = vshrl.u32 2475754826, %v142
    %v146 = vor.u32 %v144, %v145
    %v147 = vshll.u32 2475754826, %v141
    %v148 = vshrl.u32 2131351028, %v142
    %v149 = vor.u32 %v147, %v148
    %v150 = vshll.u32 2131351028, %v141
    %v151 = vshrl.u32 2102212464, %v142
    %v152 = vor.u32 %v150, %v151
    %v153 = vshll.u32 2102212464, %v141
    %v154 = vshrl.u32 920167782, %v142
    %v155 = vor.u32 %v153, %v154
    %v156 = vshll.u32 920167782, %v141
    %v157 = vshrl.u32 1326507024, %v142
    %v158 = vor.u32 %v156, %v157
    %vm159 = vcmp.lt.s32.totalorder %v140, 1
    %vm160 = vcmp.lt.s32.totalorder %v140, 2
    %vm161 = vcmp.lt.s32.totalorder %v140, 3
    %vm162 = vcmp.lt.s32.totalorder %v140, 4
    %v163 = vsel %vm159, %v143, %v146
    %v164 = vsel %vm162, %v152, 2102212464
    %v165 = vsel %vm161, %v149, %v164
    %v166 = vsel %vm160, %v163, %v165
    %v167 = vsel %vm159, %v146, %v149
    %v168 = vsel %vm162, %v155, 920167782
    %v169 = vsel %vm161, %v152, %v168
    %v170 = vsel %vm160, %v167, %v169
    %v171 = vsel %vm159, %v149, %v152
    %v172 = vsel %vm162, %v158, 1326507024
    %v173 = vsel %vm161, %v155, %v172
    %v174 = vsel %vm160, %v171, %v173
    %v175 = vshll.u32 %v135, 8
    %v176 = vmul.u32.u64.compose %v175, %v174
    %v177 = vextract.low.u32 %v176
    %v178 = vextract.high.u32 %v176
    %v179 = vmul.u32.u64.compose %v175, %v170
    %v180 = vextract.low.u32 %v179
    %v181 = vextract.high.u32 %v179
    %v182 = vmul.u32 %v175, %v166
    %v183 = vadd.s32 %v178, %v180
    %vm184 = vc.u32 %v178, %v180
    %v185 = vadd.s32 %v181, 1
    %v186 = vsel %vm184, %v185, %v181
    %v187 = vadd.s32 %v182, %v186
    %v188 = vadd.s32 %v187, 536870912
    %v189 = vshrl.u32 %v188, 30
    %v190 = vshll.u32 %v189, 30
    %v191 = vsub.s32 %v187, %v190
    %vm192 = vcmp.lt.s32.totalorder %v191, 0
    %v193 = vsub.s32 0, %v191
    %v194 = vsel %vm192, %v193, %v191
    %v195 = vclz %v194
    %v196 = vsub.s32 %v195, 2
    %vm197 = vcmp.gt.s32.totalorder 0, %v196
    %v198 = vsel %vm197, 0, %v196
    %v199 = vsub.s32 32, %v198
    %v200 = vshll.u32 %v191, %v198
    %v201 = vshrl.u32 %v183, %v199
    %v202 = vor.u32 %v200, %v201
    %v203 = vsub.s32 4294967266, %v198
    %v204 = vadd.s32 %v203, 127
    %v205 = vshll.u32 %v204, 23
    %v206 = vor.u32 4788187, %v205
    %v207 = vand.u32 2147483647, %v206
    %v209 = vcvt.s32.f32 %v202
    %v210 = vmul.f32 %v209, %v207
    %v211 = vxor.u32 %v210, 2147483648
    %v212 = vsel %vm129, %v211, %v210
    %v213 = vsub.s32 4, %v189
    %v214 = vsel %vm129, %v213, %v189
    %v215 = vsel %vm128, %v124, %v212
    %v216 = vsel %vm128, 0, %v214
    %v217 = vcosq.f32.pop %v215
    %v218 = vsinq.f32.pop %v215
    %vm219 = vweird.f32 %v124
    %v220 = vadd.s32 %v216, 3
    %v221 = vand.u32 %v220, 3
    %vm222 = vcmp.lt.s32.totalorder %v221, 2
    %vm223 = vcmp.eq.s32.totalorder %v221, 0
    %v224 = vxor.u32 %v218, 2147483648
    %v225 = vsel %vm223, %v217, %v224
    %vm226 = vcmp.eq.s32.totalorder %v221, 2
    %v227 = vxor.u32 %v217, 2147483648
    %v228 = vsel %vm226, %v227, %v218
    %v229 = vsel %vm222, %v225, %v228
    %v230 = vsel %vm219, nan, %v229
    %231 = vst [vmem:[#allocation7] sm:$0xff] %v230
    // Predicated region
    $region22: #{tpu_custom_call.1} parent=1 // pred_check
      _
    $region23: #{tpu_custom_call.1} parent=1 // pred_check_branch
      %233 = sbr.rel (0) target = $region25
    $region24: #{tpu_custom_call.1} parent=1 // pred_region
      %s235 = ssub.s32 128, 128
      %236 = vsyncadd [#allocation4], %s235
      %s238 = sshll.u32 [#allocation7], 4
      %s239 = int_to_ptr.vmem [resolvable:$true] %s238
      %241 = dma.vmem_to_hbm [thread:$0]  %s239, 128, %s3, [#allocation4]
    $region25: #{tpu_custom_call.1} parent=1 // pred_fallthru
      _
    // Predicated region
    $region26: #{tpu_custom_call.1} parent=1 // pred_check
      _
    $region27: #{tpu_custom_call.1} parent=1 // pred_check_branch
      %243 = sbr.rel (0) target = $region29
    $region28: #{tpu_custom_call.1} parent=1 // pred_region
      %244 = dma.done [#allocation4], 128
    $region29: #{tpu_custom_call.1} parent=1 // pred_fallthru
      _
    %245 = vsyncpa [#allocation3], 1
    %246 = vsyncpa [#allocation6], 1
    %247 = vsyncpa [#allocation4], 1

// kernel: tpu_custom_call.1
$region0: #{tpu_custom_call.1}
  #allocation0 [shape = 'u32[]', space=smem, size = 0x4, offset = 0x4, fixed_abs, tag = 'smem constant byte address 0x4 - core index']
  #allocation1 [shape = 'u32[144,128]{1,0:T(1,128)}', space=vmem, size = 0x12000, scoped, tag = 'internal scratch']
  %s0 = inlined_call_operand.hbm [shape: f32[8,32], index: 0, kind: input, shape index: {}]
  %s1 = inlined_call_operand.hbm [shape: f32[32,128], index: 1, kind: input, shape index: {}]
  %s2 = inlined_call_operand.vmem [shape: f32[1,128], index: 2, kind: input, shape index: {}]
  %s3 = inlined_call_operand.hbm [shape: f32[8,128], index: 3, kind: output, shape index: {}]
  %s4 = sld [smem:[#allocation0]]
  $region30: #{tpu_custom_call.1} parent=0
    _
  %s6 = ssub.s32 1, %s4
  %s7 = scalar_select 0, %s6, %s4
  $region1: #{tpu_custom_call.1} parent=0
    #allocation2 [shape = 'u8[4096]{0}', space=vmem, size = 0x1000, scoped, tag = 'input window, operand 0, single buffered']
    #allocation3 [shape = 's32[1]{0}', space=sflag, size = 0x4, scoped, tag = 'scoped memory for tpu_custom_call.1']
    #allocation4 [shape = 's32[1]{0}', space=sflag, size = 0x4, scoped, tag = 'scoped memory for tpu_custom_call.1']
    #allocation5 [shape = 'u8[16384]{0}', space=vmem, size = 0x4000, scoped, tag = 'input window, operand 1, single buffered']
    #allocation6 [shape = 's32[1]{0}', space=sflag, size = 0x4, scoped, tag = 'scoped memory for tpu_custom_call.1']
    #allocation7 [shape = 'u8[4096]{0}', space=vmem, size = 0x1000, scoped, tag = 'output window, operand 0, single buffered']
    %8 = vsyncpa [#allocation3], 0
    %9 = vsyncpa [#allocation6], 0
    %10 = vsyncpa [#allocation4], 0
    // Predicated region
    $region2: #{tpu_custom_call.1} parent=1 // pred_check
      _
    $region3: #{tpu_custom_call.1} parent=1 // pred_check_branch
      %12 = sbr.rel (0) target = $region5
    $region4: #{tpu_custom_call.1} parent=1 // pred_region
      %s14 = ssub.s32 128, 128
      %15 = vsyncadd [#allocation3], %s14
      %s17 = sshll.u32 [#allocation2], 4
      %s18 = int_to_ptr.vmem [resolvable:$true] %s17
      %20 = dma.hbm_to_vmem [thread:$0]  %s0, 128, %s18, [#allocation3]
    $region5: #{tpu_custom_call.1} parent=1 // pred_fallthru
      _
    // Predicated region
    $region6: #{tpu_custom_call.1} parent=1 // pred_check
      _
    $region7: #{tpu_custom_call.1} parent=1 // pred_check_branch
      %22 = sbr.rel (0) target = $region9
    $region8: #{tpu_custom_call.1} parent=1 // pred_region
      %s24 = ssub.s32 512, 512
      %25 = vsyncadd [#allocation6], %s24
      %s26 = sshll.u32 [#allocation5], 4
      %s27 = int_to_ptr.vmem [resolvable:$true] %s26
      %32 = dma.hbm_to_vmem [thread:$0]  %s1, 512, %s27, [#allocation6], 128, 128, 8
    $region9: #{tpu_custom_call.1} parent=1 // pred_fallthru
      _
    // Predicated region
    $region10: #{tpu_custom_call.1} parent=1 // pred_check
      _
    $region11: #{tpu_custom_call.1} parent=1 // pred_check_branch
      %34 = sbr.rel (0) target = $region13
    $region12: #{tpu_custom_call.1} parent=1 // pred_region
      _
    $region13: #{tpu_custom_call.1} parent=1 // pred_fallthru
      _
    // Predicated region
    $region14: #{tpu_custom_call.1} parent=1 // pred_check
      _
    $region15: #{tpu_custom_call.1} parent=1 // pred_check_branch
      %36 = sbr.rel (0) target = $region17
    $region16: #{tpu_custom_call.1} parent=1 // pred_region
      %37 = dma.done [#allocation3], 128
    $region17: #{tpu_custom_call.1} parent=1 // pred_fallthru
      _
    // Predicated region
    $region18: #{tpu_custom_call.1} parent=1 // pred_check
      _
    $region19: #{tpu_custom_call.1} parent=1 // pred_check_branch
      %39 = sbr.rel (0) target = $region21
    $region20: #{tpu_custom_call.1} parent=1 // pred_region
      %40 = dma.done [#allocation6], 512
    $region21: #{tpu_custom_call.1} parent=1 // pred_fallthru
      _
    %v41 = vld [vmem:[#allocation2] sm:$0xff]
    %v42 = vld [vmem:[#allocation5] sm:$0xff]
    %v43 = vld [vmem:[#allocation5 + $0x8] sm:$0xff]
    %v44 = vld [vmem:[#allocation5 + $0x10] sm:$0xff]
    %v45 = vld [vmem:[#allocation5 + $0x18] sm:$0xff]
    %v46 = vld [vmem:[%s2] sm:$0x1]
    %v48 = vlaneseq
    %v49 = vshrl.u32 %v48, 7
    %v50 = vsub.s32 0, %v49
    %v51 = vrot.slane %v46, %v50
    %vm53 = vcmask 261120
    %v55 = vsel %vm53, %v41, 0
    %57 = vmatprep.subr.mxu0 0.0
    %58 = vmatpush1.msra.mxu0 %v42
    %59 = vmatprep.subr.mxu0 0.0
    %60 = vmatpush1.msra.mxu0 %v43
    %61 = vmatprep.subr.mxu0 0.0
    %62 = vmatpush1.msra.mxu0 %v44
    %63 = vmatprep.subr.mxu0 0.0
    %64 = vmatpush1.msra.mxu0 %v45
    %65 = vmatprep.subr.mxu0 0.0
    %66 = vmatpush1.msra.mxu0 0.0
    %67 = vmatprep.subr.mxu0 0.0
    %68 = vmatpush1.msra.mxu0 0.0
    %69 = vmatprep.subr.mxu0 0.0
    %70 = vmatpush1.msra.mxu0 0.0
    %71 = vmatprep.subr.mxu0 0.0
    %72 = vmatpush1.msra.mxu0 0.0
    %73 = vmatprep.subr.mxu0 0.0
    %74 = vmatpush1.msra.mxu0 0.0
    %75 = vmatprep.subr.mxu0 0.0
    %76 = vmatpush1.msra.mxu0 0.0
    %77 = vmatprep.subr.mxu0 0.0
    %78 = vmatpush1.msra.mxu0 0.0
    %79 = vmatprep.subr.mxu0 0.0
    %80 = vmatpush1.msra.mxu0 0.0
    %81 = vmatprep.subr.mxu0 0.0
    %82 = vmatpush1.msra.mxu0 0.0
    %83 = vmatprep.subr.mxu0 0.0
    %84 = vmatpush1.msra.mxu0 0.0
    %85 = vmatprep.subr.mxu0 0.0
    %86 = vmatpush1.msra.mxu0 0.0
    %87 = vmatprep.subr.mxu0 0.0
    %88 = vmatpush1.msra.mxu0 0.0
    %89 = vmatprep.subr.mxu0 0.0
    %90 = vmatpush1.msra.mxu0 0.0
    %91 = vmatprep.subr.mxu0 0.0
    %92 = vmatpush1.msra.mxu0 0.0
    %93 = vmatprep.subr.mxu0 0.0
    %94 = vmatpush1.msra.mxu0 0.0
    %95 = vmatprep.subr.mxu0 0.0
    %96 = vmatpush1.msra.mxu0 0.0
    %97 = vmatprep.subr.mxu0 0.0
    %98 = vmatpush1.msra.mxu0 0.0
    %99 = vmatprep.subr.mxu0 0.0
    %100 = vmatpush1.msra.mxu0 0.0
    %101 = vmatprep.subr.mxu0 0.0
    %102 = vmatpush1.msra.mxu0 0.0
    %103 = vmatprep.subr.mxu0 0.0
    %104 = vmatpush1.msra.mxu0 0.0
    %105 = vmatprep.subr.mxu0 0.0
    %106 = vmatpush1.msra.mxu0 0.0
    %107 = vmatprep.subr.mxu0 0.0
    %108 = vmatpush1.msra.mxu0 0.0
    %109 = vmatprep.subr.mxu0 0.0
    %110 = vmatpush1.msra.mxu0 0.0
    %111 = vmatprep.subr.mxu0 0.0
    %112 = vmatpush1.msra.mxu0 0.0
    %113 = vmatprep.subr.mxu0 0.0
    %114 = vmatpush1.msra.mxu0 0.0
    %115 = vmatprep.subr.mxu0 0.0
    %116 = vmatpush1.msra.mxu0 0.0
    %117 = vmatprep.subr.mxu0 0.0
    %118 = vmatpush1.msra.mxu0 0.0
    %119 = vmatprep.subr.mxu0 0.0
    %120 = vmatpush1.msra.mxu0 0.0
    %121 = vmatprep.mubr.f32.mxu0 0.0
    %122 = vmatmul.mubr.f32.gmra.mrb[0].mxu0 %v55
    %v123 = vpop.f32.mrb[0].mxu0
    %v124 = vadd.f32 %v51, %v123
    %v125 = vpop.f32.mrb[0].mxu0
    %126 = vdwg.mxu0
    %v127 = vand.u32 2147483647, %v124
    %vm128 = vcmp.le.f32.partialorder %v127, 0.7853982
    %vm129 = vcmp.lt.s32.totalorder %v124, 0
    %v130 = vand.u32 %v124, 2139095040
    %v131 = vshrl.u32 %v130, 23
    %v132 = vsub.s32 %v131, 127
    %v133 = vand.u32 2147483647, %v124
    %v134 = vand.u32 %v133, 8388607
    %v135 = vor.u32 %v134, 8388608
    %v136 = vsub.s32 0, %v135
    %v137 = vadd.s32 %v132, 1
    %vm138 = vcmp.gt.s32.totalorder %v137, 0
    %v139 = vsel %vm138, %v137, 0
    %v140 = vshrl.u32 %v139, 5
    %v141 = vand.u32 %v139, 31
    %v142 = vsub.s32 32, %v141
    %v143 = vshrl.u32 683565275, %v142
    %v144 = vshll.u32 683565275, %v141
    %v145 = vshrl.u32 2475754826, %v142
    %v146 = vor.u32 %v144, %v145
    %v147 = vshll.u32 2475754826, %v141
    %v148 = vshrl.u32 2131351028, %v142
    %v149 = vor.u32 %v147, %v148
    %v150 = vshll.u32 2131351028, %v141
    %v151 = vshrl.u32 2102212464, %v142
    %v152 = vor.u32 %v150, %v151
    %v153 = vshll.u32 2102212464, %v141
    %v154 = vshrl.u32 920167782, %v142
    %v155 = vor.u32 %v153, %v154
    %v156 = vshll.u32 920167782, %v141
    %v157 = vshrl.u32 1326507024, %v142
    %v158 = vor.u32 %v156, %v157
    %vm159 = vcmp.lt.s32.totalorder %v140, 1
    %vm160 = vcmp.lt.s32.totalorder %v140, 2
    %vm161 = vcmp.lt.s32.totalorder %v140, 3
    %vm162 = vcmp.lt.s32.totalorder %v140, 4
    %v163 = vsel %vm159, %v143, %v146
    %v164 = vsel %vm162, %v152, 2102212464
    %v165 = vsel %vm161, %v149, %v164
    %v166 = vsel %vm160, %v163, %v165
    %v167 = vsel %vm159, %v146, %v149
    %v168 = vsel %vm162, %v155, 920167782
    %v169 = vsel %vm161, %v152, %v168
    %v170 = vsel %vm160, %v167, %v169
    %v171 = vsel %vm159, %v149, %v152
    %v172 = vsel %vm162, %v158, 1326507024
    %v173 = vsel %vm161, %v155, %v172
    %v174 = vsel %vm160, %v171, %v173
    %v175 = vshll.u32 %v135, 8
    %v176 = vmul.u32.u64.compose %v175, %v174
    %v177 = vextract.low.u32 %v176
    %v178 = vextract.high.u32 %v176
    %v179 = vmul.u32.u64.compose %v175, %v170
    %v180 = vextract.low.u32 %v179
    %v181 = vextract.high.u32 %v179
    %v182 = vmul.u32 %v175, %v166
    %v183 = vadd.s32 %v178, %v180
    %vm184 = vc.u32 %v178, %v180
    %v185 = vadd.s32 %v181, 1
    %v186 = vsel %vm184, %v185, %v181
    %v187 = vadd.s32 %v182, %v186
    %v188 = vadd.s32 %v187, 536870912
    %v189 = vshrl.u32 %v188, 30
    %v190 = vshll.u32 %v189, 30
    %v191 = vsub.s32 %v187, %v190
    %vm192 = vcmp.lt.s32.totalorder %v191, 0
    %v193 = vsub.s32 0, %v191
    %v194 = vsel %vm192, %v193, %v191
    %v195 = vclz %v194
    %v196 = vsub.s32 %v195, 2
    %vm197 = vcmp.gt.s32.totalorder 0, %v196
    %v198 = vsel %vm197, 0, %v196
    %v199 = vsub.s32 32, %v198
    %v200 = vshll.u32 %v191, %v198
    %v201 = vshrl.u32 %v183, %v199
    %v202 = vor.u32 %v200, %v201
    %v203 = vsub.s32 4294967266, %v198
    %v204 = vadd.s32 %v203, 127
    %v205 = vshll.u32 %v204, 23
    %v206 = vor.u32 4788187, %v205
    %v207 = vand.u32 2147483647, %v206
    %v209 = vcvt.s32.f32 %v202
    %v210 = vmul.f32 %v209, %v207
    %v211 = vxor.u32 %v210, 2147483648
    %v212 = vsel %vm129, %v211, %v210
    %v213 = vsub.s32 4, %v189
    %v214 = vsel %vm129, %v213, %v189
    %v215 = vsel %vm128, %v124, %v212
    %v216 = vsel %vm128, 0, %v214
    %v217 = vcosq.f32.pop %v215
    %v218 = vsinq.f32.pop %v215
    %vm219 = vweird.f32 %v124
    %v220 = vadd.s32 %v216, 3
    %v221 = vand.u32 %v220, 3
    %vm222 = vcmp.lt.s32.totalorder %v221, 2
    %vm223 = vcmp.eq.s32.totalorder %v221, 0
    %v224 = vxor.u32 %v218, 2147483648
    %v225 = vsel %vm223, %v217, %v224
    %vm226 = vcmp.eq.s32.totalorder %v221, 2
    %v227 = vxor.u32 %v217, 2147483648
    %v228 = vsel %vm226, %v227, %v218
    %v229 = vsel %vm222, %v225, %v228
    %v230 = vsel %vm219, nan, %v229
    %231 = vst [vmem:[#allocation7] sm:$0xff] %v230
    // Predicated region
    $region22: #{tpu_custom_call.1} parent=1 // pred_check
      _
    $region23: #{tpu_custom_call.1} parent=1 // pred_check_branch
      %233 = sbr.rel (0) target = $region25
    $region24: #{tpu_custom_call.1} parent=1 // pred_region
      %s235 = ssub.s32 128, 128
      %236 = vsyncadd [#allocation4], %s235
      %s238 = sshll.u32 [#allocation7], 4
      %s239 = int_to_ptr.vmem [resolvable:$true] %s238
      %241 = dma.vmem_to_hbm [thread:$0]  %s239, 128, %s3, [#allocation4]
    $region25: #{tpu_custom_call.1} parent=1 // pred_fallthru
      _
    // Predicated region
    $region26: #{tpu_custom_call.1} parent=1 // pred_check
      _
    $region27: #{tpu_custom_call.1} parent=1 // pred_check_branch
      %243 = sbr.rel (0) target = $region29
    $region28: #{tpu_custom_call.1} parent=1 // pred_region
      %244 = dma.done [#allocation4], 128
    $region29: #{tpu_custom_call.1} parent=1 // pred_fallthru
      _
    %245 = vsyncpa [#allocation3], 1
    %246 = vsyncpa [#allocation6], 1
    %247 = vsyncpa [#allocation4], 1

</llo_original>
